<compile_context>
chip_gen: v6e
topology: v6e:2x2x1
jax: 0.10.0
libtpu: 0.0.40
codegen_flags: <defaults>
</compile_context>

<pallas_src>
import functools

import jax
import jax.numpy as jnp
from jax.experimental import pallas as pl
from jax.experimental.pallas import tpu as pltpu


def _lin_kernel(x_ref, rho_ref, gamma_ref, beta_ref, out_ref, *, eps):
    # x_ref / out_ref block: (C, HW); rho_ref: (C, 2); gamma_ref / beta_ref: (C, 1)
    x = x_ref[...].astype(jnp.float32)                                   # [C, HW]
    c, hw = x.shape

    # ---- instance-norm statistics: per channel over H*W (unbiased var) ------
    in_mean = jnp.sum(x, axis=1, keepdims=True) * (1.0 / hw)             # [C, 1]
    in_d = x - in_mean
    in_var = jnp.sum(in_d * in_d, axis=1, keepdims=True) * (1.0 / (hw - 1))
    out_in = in_d * jax.lax.rsqrt(in_var + eps)

    # ---- layer-norm statistics: per image over C*H*W (unbiased var) ---------
    # mean over everything == mean of the per-channel means (equal counts)
    ln_mean = jnp.sum(in_mean, axis=0, keepdims=True) * (1.0 / c)        # [1, 1]
    ln_d = x - ln_mean
    sq_row = jnp.sum(ln_d * ln_d, axis=1, keepdims=True)                 # [C, 1]
    ln_var = jnp.sum(sq_row, axis=0, keepdims=True) * (1.0 / (c * hw - 1))
    out_ln = ln_d * jax.lax.rsqrt(ln_var + eps)

    # ---- 2-way softmax gate over rho (per channel) ---------------------------
    r = rho_ref[...].astype(jnp.float32)                                 # [C, 2]
    r0 = r[:, 0:1]
    r1 = r[:, 1:2]
    m = jnp.maximum(r0, r1)
    e0 = jnp.exp(r0 - m)
    e1 = jnp.exp(r1 - m)
    inv_s = 1.0 / (e0 + e1)
    rho0 = e0 * inv_s                                                    # [C, 1]
    rho1 = e1 * inv_s                                                    # [C, 1]

    g = gamma_ref[...].astype(jnp.float32)                               # [C, 1]
    b = beta_ref[...].astype(jnp.float32)                                # [C, 1]
    out = (rho0 * out_in + rho1 * out_ln) * g + b
    out_ref[...] = out.astype(out_ref.dtype)


def lin_forward(x, rho, gamma, beta, *, eps=1e-5):
    """Pallas implementation of LIN.forward (using_bn=False path).

    x:     [B, C, H, W]   input feature map
    rho:   [1, C, 2]      pre-softmax gate parameter
    gamma: [1, C, 1, 1]   affine scale
    beta:  [1, C, 1, 1]   affine shift
    """
    bsz, c, h, w = x.shape
    hw = h * w
    x3 = x.reshape(bsz, c, hw)
    rho2 = rho.reshape(c, 2)
    g2 = gamma.reshape(c, 1)
    b2 = beta.reshape(c, 1)

    kernel = functools.partial(_lin_kernel, eps=float(eps))
    out = pl.pallas_call(
        kernel,
        out_shape=jax.ShapeDtypeStruct((bsz, c, hw), x.dtype),
        grid_spec=pltpu.PrefetchScalarGridSpec(
            num_scalar_prefetch=0,
            grid=(bsz,),
            in_specs=[
                pl.BlockSpec((None, c, hw), lambda i: (i, 0, 0)),  # x: one image / step
                pl.BlockSpec((c, 2), lambda i: (0, 0)),            # rho  (VMEM-resident)
                pl.BlockSpec((c, 1), lambda i: (0, 0)),            # gamma (VMEM-resident)
                pl.BlockSpec((c, 1), lambda i: (0, 0)),            # beta  (VMEM-resident)
            ],
            out_specs=pl.BlockSpec((None, c, hw), lambda i: (i, 0, 0)),
        ),
        compiler_params=pltpu.CompilerParams(
            dimension_semantics=("parallel",)),
    )(x3, rho2, g2, b2)
    return out.reshape(bsz, c, h, w)


def lin_forward_ref(x, rho, gamma, beta, *, eps=1e-5):
    """Pure-JAX reference mirroring the PyTorch module line by line."""
    in_mean = jnp.mean(x, axis=(2, 3), keepdims=True)
    in_var = jnp.var(x, axis=(2, 3), keepdims=True, ddof=1)       # torch.var: unbiased
    out_in = (x - in_mean) / jnp.sqrt(in_var + eps)
    ln_mean = jnp.mean(x, axis=(1, 2, 3), keepdims=True)
    ln_var = jnp.var(x, axis=(1, 2, 3), keepdims=True, ddof=1)
    out_ln = (x - ln_mean) / jnp.sqrt(ln_var + eps)
    r = jax.nn.softmax(rho, axis=2)                               # [1, C, 2]
    rho0 = r[:, :, 0][:, :, None, None]
    rho1 = r[:, :, 1][:, :, None, None]
    out = rho0 * out_in + rho1 * out_ln
    return out * gamma + beta


if __name__ == "__main__":
    key = jax.random.PRNGKey(0)
    kx, kr, kg, kb = jax.random.split(key, 4)

    B, C, H, W = 2, 4, 16, 16
    x = jax.random.normal(kx, (B, C, H, W), dtype=jnp.float32)

    # Parameters: module init (rho = [1, 3.2], gamma = 1, beta = 0) plus a small
    # deterministic perturbation so the gate/affine paths are actually exercised.
    rho = (jnp.broadcast_to(jnp.array([1.0, 3.2], jnp.float32), (1, C, 2))
           + 0.1 * jax.random.normal(kr, (1, C, 2), dtype=jnp.float32))
    gamma = 1.0 + 0.1 * jax.random.normal(kg, (1, C, 1, 1), dtype=jnp.float32)
    beta = 0.1 * jax.random.normal(kb, (1, C, 1, 1), dtype=jnp.float32)

    out = lin_forward(x, rho, gamma, beta)
    out = jax.block_until_ready(out)
    ref = lin_forward_ref(x, rho, gamma, beta)

    if out.shape == (B, C, H, W) and jnp.allclose(out, ref, atol=1e-4, rtol=1e-4):
        print("KERNEL_OK")
    else:
        print("MISMATCH: max abs err =", float(jnp.max(jnp.abs(out - ref))))
</pallas_src>

<mosaic_0001>
module attributes {stable_mosaic.version = 11 : i64} {
  func.func @_lin_kernel(%arg0: i32, %arg1: memref<1x4x256xf32, #tpu.memory_space<vmem>>, %arg2: memref<4x2xf32, #tpu.memory_space<vmem>>, %arg3: memref<4x1xf32, #tpu.memory_space<vmem>>, %arg4: memref<4x1xf32, #tpu.memory_space<vmem>>, %arg5: memref<1x4x256xf32, #tpu.memory_space<vmem>>) attributes {dimension_semantics = [#tpu.dimension_semantics<parallel>], iteration_bounds = array<i64: 2>, scalar_prefetch = 0 : i64, scratch_operands = 0 : i64, tpu.core_type = #tpu.core_type<tc>, window_params = [{transform_indices = @transform_0, window_bounds = array<i64: 1, 4, 256>}, {pipeline_mode = #tpu.pipeline_mode<synchronous>, transform_indices = @transform_1, window_bounds = array<i64: 4, 2>}, {pipeline_mode = #tpu.pipeline_mode<synchronous>, transform_indices = @transform_2, window_bounds = array<i64: 4, 1>}, {pipeline_mode = #tpu.pipeline_mode<synchronous>, transform_indices = @transform_3, window_bounds = array<i64: 4, 1>}, {transform_indices = @transform_4, window_bounds = array<i64: 1, 4, 256>}]} {
    %c0 = arith.constant 0 : index
    %c0_0 = arith.constant 0 : index
    %c0_1 = arith.constant 0 : index
    %0 = vector.load %arg1[%c0, %c0_0, %c0_1] : memref<1x4x256xf32, #tpu.memory_space<vmem>>, vector<1x4x256xf32>
    %1 = vector.shape_cast %0 : vector<1x4x256xf32> to vector<4x256xf32>
    %cst = arith.constant dense<0.000000e+00> : vector<4xf32>
    %2 = vector.multi_reduction <add>, %1, %cst [1] : vector<4x256xf32> to vector<4xf32>
    %3 = vector.shape_cast %2 : vector<4xf32> to vector<4x1xf32>
    %cst_2 = arith.constant 3.906250e-03 : f32
    %4 = vector.broadcast %cst_2 : f32 to vector<4x1xf32>
    %5 = arith.mulf %3, %4 : vector<4x1xf32>
    %6 = vector.broadcast %5 : vector<4x1xf32> to vector<4x256xf32>
    %7 = arith.subf %1, %6 : vector<4x256xf32>
    %8 = arith.mulf %7, %7 : vector<4x256xf32>
    %cst_3 = arith.constant dense<0.000000e+00> : vector<4xf32>
    %9 = vector.multi_reduction <add>, %8, %cst_3 [1] : vector<4x256xf32> to vector<4xf32>
    %10 = vector.shape_cast %9 : vector<4xf32> to vector<4x1xf32>
    %cst_4 = arith.constant 0.00392156886 : f32
    %11 = vector.broadcast %cst_4 : f32 to vector<4x1xf32>
    %12 = arith.mulf %10, %11 : vector<4x1xf32>
    %cst_5 = arith.constant 9.99999974E-6 : f32
    %13 = vector.broadcast %cst_5 : f32 to vector<4x1xf32>
    %14 = arith.addf %12, %13 : vector<4x1xf32>
    %15 = math.rsqrt %14 : vector<4x1xf32>
    %16 = vector.broadcast %15 : vector<4x1xf32> to vector<4x256xf32>
    %17 = arith.mulf %7, %16 : vector<4x256xf32>
    %cst_6 = arith.constant dense<0.000000e+00> : vector<1xf32>
    %18 = vector.multi_reduction <add>, %5, %cst_6 [0] : vector<4x1xf32> to vector<1xf32>
    %19 = vector.shape_cast %18 : vector<1xf32> to vector<1x1xf32>
    %cst_7 = arith.constant 2.500000e-01 : f32
    %20 = vector.broadcast %cst_7 : f32 to vector<1x1xf32>
    %21 = arith.mulf %19, %20 : vector<1x1xf32>
    %22 = vector.broadcast %21 : vector<1x1xf32> to vector<4x256xf32>
    %23 = arith.subf %1, %22 : vector<4x256xf32>
    %24 = arith.mulf %23, %23 : vector<4x256xf32>
    %cst_8 = arith.constant dense<0.000000e+00> : vector<4xf32>
    %25 = vector.multi_reduction <add>, %24, %cst_8 [1] : vector<4x256xf32> to vector<4xf32>
    %26 = vector.shape_cast %25 : vector<4xf32> to vector<4x1xf32>
    %cst_9 = arith.constant dense<0.000000e+00> : vector<1xf32>
    %27 = vector.multi_reduction <add>, %26, %cst_9 [0] : vector<4x1xf32> to vector<1xf32>
    %28 = vector.shape_cast %27 : vector<1xf32> to vector<1x1xf32>
    %cst_10 = arith.constant 9.77517105E-4 : f32
    %29 = vector.broadcast %cst_10 : f32 to vector<1x1xf32>
    %30 = arith.mulf %28, %29 : vector<1x1xf32>
    %cst_11 = arith.constant 9.99999974E-6 : f32
    %31 = vector.broadcast %cst_11 : f32 to vector<1x1xf32>
    %32 = arith.addf %30, %31 : vector<1x1xf32>
    %33 = math.rsqrt %32 : vector<1x1xf32>
    %34 = vector.broadcast %33 : vector<1x1xf32> to vector<4x256xf32>
    %35 = arith.mulf %23, %34 : vector<4x256xf32>
    %c0_12 = arith.constant 0 : index
    %c0_13 = arith.constant 0 : index
    %36 = vector.load %arg2[%c0_12, %c0_13] : memref<4x2xf32, #tpu.memory_space<vmem>>, vector<4x2xf32>
    %37 = vector.extract_strided_slice %36 {offsets = [0, 0], sizes = [4, 1], strides = [1, 1]} : vector<4x2xf32> to vector<4x1xf32>
    %38 = vector.extract_strided_slice %36 {offsets = [0, 1], sizes = [4, 1], strides = [1, 1]} : vector<4x2xf32> to vector<4x1xf32>
    %39 = arith.maximumf %37, %38 : vector<4x1xf32>
    %40 = arith.subf %37, %39 : vector<4x1xf32>
    %41 = math.exp %40 : vector<4x1xf32>
    %42 = arith.subf %38, %39 : vector<4x1xf32>
    %43 = math.exp %42 : vector<4x1xf32>
    %44 = arith.addf %41, %43 : vector<4x1xf32>
    %cst_14 = arith.constant 1.000000e+00 : f32
    %45 = vector.broadcast %cst_14 : f32 to vector<4x1xf32>
    %46 = arith.divf %45, %44 : vector<4x1xf32>
    %47 = arith.mulf %41, %46 : vector<4x1xf32>
    %48 = arith.mulf %43, %46 : vector<4x1xf32>
    %c0_15 = arith.constant 0 : index
    %c0_16 = arith.constant 0 : index
    %49 = vector.load %arg3[%c0_15, %c0_16] : memref<4x1xf32, #tpu.memory_space<vmem>>, vector<4x1xf32>
    %c0_17 = arith.constant 0 : index
    %c0_18 = arith.constant 0 : index
    %50 = vector.load %arg4[%c0_17, %c0_18] : memref<4x1xf32, #tpu.memory_space<vmem>>, vector<4x1xf32>
    %51 = vector.broadcast %47 : vector<4x1xf32> to vector<4x256xf32>
    %52 = arith.mulf %51, %17 : vector<4x256xf32>
    %53 = vector.broadcast %48 : vector<4x1xf32> to vector<4x256xf32>
    %54 = arith.mulf %53, %35 : vector<4x256xf32>
    %55 = arith.addf %52, %54 : vector<4x256xf32>
    %56 = vector.broadcast %49 : vector<4x1xf32> to vector<4x256xf32>
    %57 = arith.mulf %55, %56 : vector<4x256xf32>
    %58 = vector.broadcast %50 : vector<4x1xf32> to vector<4x256xf32>
    %59 = arith.addf %57, %58 : vector<4x256xf32>
    %c0_19 = arith.constant 0 : index
    %c0_20 = arith.constant 0 : index
    %c0_21 = arith.constant 0 : index
    %60 = vector.load %arg5[%c0_19, %c0_20, %c0_21] : memref<1x4x256xf32, #tpu.memory_space<vmem>>, vector<1x4x256xf32>
    %61 = vector.shape_cast %60 : vector<1x4x256xf32> to vector<4x256xf32>
    %62 = vector.shape_cast %59 : vector<4x256xf32> to vector<1x4x256xf32>
    tpu.vector_store %arg5[%c0_19, %c0_20, %c0_21], %62 {strides = array<i32>} : memref<1x4x256xf32, #tpu.memory_space<vmem>>, vector<1x4x256xf32>,
    return
  }
  func.func @transform_0(%arg0: i32) -> (i32, i32, i32) {
    %c0_i32 = arith.constant 0 : i32
    %c0_i32_0 = arith.constant 0 : i32
    %c0_i32_1 = arith.constant 0 : i32
    return %arg0, %c0_i32, %c0_i32_0 : i32, i32, i32
  }
  func.func @transform_1(%arg0: i32) -> (i32, i32) {
    %c0_i32 = arith.constant 0 : i32
    %c0_i32_0 = arith.constant 0 : i32
    %c0_i32_1 = arith.constant 0 : i32
    return %c0_i32, %c0_i32_0 : i32, i32
  }
  func.func @transform_2(%arg0: i32) -> (i32, i32) {
    %c0_i32 = arith.constant 0 : i32
    %c0_i32_0 = arith.constant 0 : i32
    %c0_i32_1 = arith.constant 0 : i32
    return %c0_i32, %c0_i32_0 : i32, i32
  }
  func.func @transform_3(%arg0: i32) -> (i32, i32) {
    %c0_i32 = arith.constant 0 : i32
    %c0_i32_0 = arith.constant 0 : i32
    %c0_i32_1 = arith.constant 0 : i32
    return %c0_i32, %c0_i32_0 : i32, i32
  }
  func.func @transform_4(%arg0: i32) -> (i32, i32, i32) {
    %c0_i32 = arith.constant 0 : i32
    %c0_i32_0 = arith.constant 0 : i32
    %c0_i32_1 = arith.constant 0 : i32
    return %arg0, %c0_i32, %c0_i32_0 : i32, i32, i32
  }
}

</mosaic_0001>

<llo_original>
// kernel: tpu_custom_call.1
$region0: #{tpu_custom_call.1}
  #allocation0 [shape = 'u32[]', space=smem, size = 0x4, offset = 0x4, fixed_abs, tag = 'smem constant byte address 0x4 - core index']
  #allocation1 [shape = 'u32[144,128]{1,0:T(1,128)}', space=vmem, size = 0x12000, scoped, tag = 'internal scratch']
  %s0 = inlined_call_operand.vmem [shape: f32[2,4,256], index: 0, kind: input, shape index: {}]
  %s1 = inlined_call_operand.vmem [shape: f32[4,2], index: 1, kind: input, shape index: {}]
  %s2 = inlined_call_operand.vmem [shape: f32[4,1], index: 2, kind: input, shape index: {}]
  %s3 = inlined_call_operand.vmem [shape: f32[4,1], index: 3, kind: input, shape index: {}]
  %s4 = inlined_call_operand.hbm [shape: f32[2,4,256], index: 4, kind: output, shape index: {}]
  %s5 = sld [smem:[#allocation0]]
  $region49: #{tpu_custom_call.1} parent=0
    _
  %s7 = ssub.s32 1, %s5
  %s8 = scalar_select 0, %s7, %s5
  $region1: #{tpu_custom_call.1} parent=0
    #allocation2 [shape = 'u8[8192]{0}', space=vmem, size = 0x2000, scoped, tag = 'output window, operand 0']
    #allocation3 [shape = 's32[2]{0}', space=sflag, size = 0x8, scoped, tag = 'scoped memory for tpu_custom_call.1']
    %9 = vsyncpa [#allocation3], 0
    %s10 = scalar_lea.sflag [#allocation3], 1
    %11 = vsyncpa %s10, 0
    loop: start=0, step=1, limit=4
    $region2: #{tpu_custom_call.1} parent=1 // loop_pre_header
      _
    $region3: #{tpu_custom_call.1} parent=1 // loop_header
      %s13 = sphi 0, %s17
      %p14 = scmp.ge.s32.totalorder %s13, 4
      %s23 = sphi 0, %s25
      %s26 = sphi 0, %s23
      %s27 = sphi 0, %s26
      %s43 = sphi 0, %s27
      %s47 = sphi 0, %s47
      %s49 = sphi 0, %s47
      %s50 = sphi 0, %s49
      %s64 = sphi 0, %s50
      %s68 = sphi 0, %s68
      %s70 = sphi 0, %s68
      %s71 = sphi 0, %s70
      %s85 = sphi 0, %s71
      %s89 = sphi 0, %s89
      %s91 = sphi 0, %s89
      %s92 = sphi 0, %s91
      %s106 = sphi 0, %s92
      %s112 = sphi 0, %s114
      %s115 = sphi 0, %s112
      %s116 = sphi 0, %s115
      %s132 = sphi 0, %s116
    $region4: #{tpu_custom_call.1} parent=1 // loop_header_branch
      %16 = sbr.rel (%p14) target = $region8
    $region5: #{tpu_custom_call.1} parent=1 // loop_body
      %s18 = ssub.s32 %s13, 1
      %s19 = ssub.s32 %s13, 2
      %s20 = sadd.s32 %s13, 1
      %s21 = ssub.s32 %s13, %s20
      %p22 = scmp.eq.s32.totalorder %s21, 0
      %s24 = sadd.s32 %s23, 1
      %s25 = scalar_select %p22, %s23, %s24
      %p28 = pneg %p22
      %p29 = scmp.eq.s32.totalorder %s13, 1
      %p30 = por %p28, %p29
      %p31 = scmp.ne.s32.totalorder %s23, %s26
      %p32 = scmp.eq.s32.totalorder %s13, 0
      %p33 = por %p31, %p32
      %p34 = scmp.ne.s32.totalorder %s23, %s26
      %p35 = scmp.eq.s32.totalorder %s18, 1
      %p36 = por %p34, %p35
      %p37 = scmp.ne.s32.totalorder %s26, %s27
      %p38 = scmp.eq.s32.totalorder %s18, 0
      %p39 = por %p37, %p38
      %p40 = scmp.ne.s32.totalorder %s26, %s27
      %p41 = scmp.eq.s32.totalorder %s19, 1
      %p42 = por %p40, %p41
      %p44 = scmp.ne.s32.totalorder %s27, %s43
      %p45 = scmp.eq.s32.totalorder %s19, 0
      %p46 = por %p44, %p45
      %s48 = sadd.s32 %s47, 1
      %p51 = scmp.eq.s32.totalorder %s13, 1
      %p52 = scmp.ne.s32.totalorder %s47, %s49
      %p53 = scmp.eq.s32.totalorder %s13, 0
      %p54 = por %p52, %p53
      %p55 = scmp.ne.s32.totalorder %s47, %s49
      %p56 = scmp.eq.s32.totalorder %s18, 1
      %p57 = por %p55, %p56
      %p58 = scmp.ne.s32.totalorder %s49, %s50
      %p59 = scmp.eq.s32.totalorder %s18, 0
      %p60 = por %p58, %p59
      %p61 = scmp.ne.s32.totalorder %s49, %s50
      %p62 = scmp.eq.s32.totalorder %s19, 1
      %p63 = por %p61, %p62
      %p65 = scmp.ne.s32.totalorder %s50, %s64
      %p66 = scmp.eq.s32.totalorder %s19, 0
      %p67 = por %p65, %p66
      %s69 = sadd.s32 %s68, 1
      %p72 = scmp.eq.s32.totalorder %s13, 1
      %p73 = scmp.ne.s32.totalorder %s68, %s70
      %p74 = scmp.eq.s32.totalorder %s13, 0
      %p75 = por %p73, %p74
      %p76 = scmp.ne.s32.totalorder %s68, %s70
      %p77 = scmp.eq.s32.totalorder %s18, 1
      %p78 = por %p76, %p77
      %p79 = scmp.ne.s32.totalorder %s70, %s71
      %p80 = scmp.eq.s32.totalorder %s18, 0
      %p81 = por %p79, %p80
      %p82 = scmp.ne.s32.totalorder %s70, %s71
      %p83 = scmp.eq.s32.totalorder %s19, 1
      %p84 = por %p82, %p83
      %p86 = scmp.ne.s32.totalorder %s71, %s85
      %p87 = scmp.eq.s32.totalorder %s19, 0
      %p88 = por %p86, %p87
      %s90 = sadd.s32 %s89, 1
      %p93 = scmp.eq.s32.totalorder %s13, 1
      %p94 = scmp.ne.s32.totalorder %s89, %s91
      %p95 = scmp.eq.s32.totalorder %s13, 0
      %p96 = por %p94, %p95
      %p97 = scmp.ne.s32.totalorder %s89, %s91
      %p98 = scmp.eq.s32.totalorder %s18, 1
      %p99 = por %p97, %p98
      %p100 = scmp.ne.s32.totalorder %s91, %s92
      %p101 = scmp.eq.s32.totalorder %s18, 0
      %p102 = por %p100, %p101
      %p103 = scmp.ne.s32.totalorder %s91, %s92
      %p104 = scmp.eq.s32.totalorder %s19, 1
      %p105 = por %p103, %p104
      %p107 = scmp.ne.s32.totalorder %s92, %s106
      %p108 = scmp.eq.s32.totalorder %s19, 0
      %p109 = por %p107, %p108
      %s110 = ssub.s32 %s13, %s20
      %p111 = scmp.eq.s32.totalorder %s110, 0
      %s113 = sadd.s32 %s112, 1
      %s114 = scalar_select %p111, %s112, %s113
      %p117 = pneg %p111
      %p118 = scmp.eq.s32.totalorder %s13, 1
      %p119 = por %p117, %p118
      %p120 = scmp.ne.s32.totalorder %s112, %s115
      %p121 = scmp.eq.s32.totalorder %s13, 0
      %p122 = por %p120, %p121
      %p123 = scmp.ne.s32.totalorder %s112, %s115
      %p124 = scmp.eq.s32.totalorder %s18, 1
      %p125 = por %p123, %p124
      %p126 = scmp.ne.s32.totalorder %s115, %s116
      %p127 = scmp.eq.s32.totalorder %s18, 0
      %p128 = por %p126, %p127
      %p129 = scmp.ne.s32.totalorder %s115, %s116
      %p130 = scmp.eq.s32.totalorder %s19, 1
      %p131 = por %p129, %p130
      %p133 = scmp.ne.s32.totalorder %s116, %s132
      %p134 = scmp.eq.s32.totalorder %s19, 0
      %p135 = por %p133, %p134
      %p136 = scmp.le.s32.totalorder 1, %s13
      %p137 = scmp.lt.s32.totalorder %s13, 3
      %p138 = pnand %p136, %p137
      %p139 = pneg %p138
      // Predicated region
      $region9: #{tpu_custom_call.1} parent=5 // pred_check
        _
      $region10: #{tpu_custom_call.1} parent=5 // pred_check_branch
        %141 = sbr.rel (%p138) target = $region12
      $region11: #{tpu_custom_call.1} parent=5 // pred_region
        %s142 = ssub.s32 %s13, 1
        // Predicated region
        $region13: #{tpu_custom_call.1} parent=11 // pred_check
          %p143 = pneg %p60
        $region14: #{tpu_custom_call.1} parent=11 // pred_check_branch
          %145 = sbr.rel (%p143) target = $region16
        $region15: #{tpu_custom_call.1} parent=11 // pred_region
          _
        $region16: #{tpu_custom_call.1} parent=11 // pred_fallthru
          _
        // Predicated region
        $region17: #{tpu_custom_call.1} parent=11 // pred_check
          %p146 = pneg %p81
        $region18: #{tpu_custom_call.1} parent=11 // pred_check_branch
          %148 = sbr.rel (%p146) target = $region20
        $region19: #{tpu_custom_call.1} parent=11 // pred_region
          _
        $region20: #{tpu_custom_call.1} parent=11 // pred_fallthru
          _
        // Predicated region
        $region21: #{tpu_custom_call.1} parent=11 // pred_check
          %p149 = pneg %p102
        $region22: #{tpu_custom_call.1} parent=11 // pred_check_branch
          %151 = sbr.rel (%p149) target = $region24
        $region23: #{tpu_custom_call.1} parent=11 // pred_region
          _
        $region24: #{tpu_custom_call.1} parent=11 // pred_fallthru
          _
      $region12: #{tpu_custom_call.1} parent=5 // pred_fallthru
        _
      %p152 = scmp.lt.s32.totalorder %s13, 2
      // Predicated region
      $region25: #{tpu_custom_call.1} parent=5 // pred_check
        %p153 = pneg %p152
      $region26: #{tpu_custom_call.1} parent=5 // pred_check_branch
        %155 = sbr.rel (%p153) target = $region28
      $region27: #{tpu_custom_call.1} parent=5 // pred_region
        // Predicated region
        $region29: #{tpu_custom_call.1} parent=27 // pred_check
          %p156 = pneg %p33
        $region30: #{tpu_custom_call.1} parent=27 // pred_check_branch
          %158 = sbr.rel (%p156) target = $region32
        $region31: #{tpu_custom_call.1} parent=27 // pred_region
          %p159 = scmp.lt.s32.totalorder %s13, 1
          %s160 = scalar_select %p159, %s13, 1
          %s161 = smul.addr %s160, 2
          %s162 = smul.addr %s161, 4
          %s163 = scalar_lea.vmem %s0, %s162
        $region32: #{tpu_custom_call.1} parent=27 // pred_fallthru
          _
      $region28: #{tpu_custom_call.1} parent=5 // pred_fallthru
        _
      %p164 = scmp.le.s32.totalorder 1, %s13
      %p165 = scmp.lt.s32.totalorder %s13, 3
      %p166 = pnand %p164, %p165
      %p167 = pneg %p166
      // Predicated region
      $region33: #{tpu_custom_call.1} parent=5 // pred_check
        _
      $region34: #{tpu_custom_call.1} parent=5 // pred_check_branch
        %169 = sbr.rel (%p166) target = $region36
      $region35: #{tpu_custom_call.1} parent=5 // pred_region
        %s170 = ssub.s32 %s13, 1
        %p171 = scmp.lt.s32.totalorder %s18, 1
        %s172 = scalar_select %p171, %s18, 1
        %s173 = smul.addr %s172, 2
        %s174 = smul.addr %s173, 4
        %s175 = scalar_lea.vmem %s0, %s174
        %p176 = pneg %p39
        %p177 = pneg %p36
        %p178 = pneg %p60
        %p179 = pneg %p57
        %p180 = pneg %p81
        %p181 = pneg %p78
        %p182 = pneg %p102
        %p183 = pneg %p99
        %p184 = pneg %p128
        %p185 = pneg %p125
        %s186 = sand.u32 %s115, 1
        %s187 = scalar_lea.sflag [#allocation3], %s186
        %s188 = sand.u32 %s115, 1
        %s189 = smul.addr %s188, 8
        %s190 = scalar_lea.vmem [#allocation2], %s189
        %p191 = scmp.lt.s32.totalorder %s18, 1
        %s192 = scalar_select %p191, %s18, 1
        %s193 = smul.addr %s192, 2
        %s194 = smul.addr %s193, 4
        %s195 = scalar_lea.vmem %s0, %s194
        %v196 = vld [vmem:[%s195] sm:$0xff]
        %v198 = vcombine.high %v196, %v196
        %vm200 = vcmask 1043456
        %v201 = vsel %vm200, %v196, 0.0
        %v202 = vsel %vm200, %v198, 0.0
        %v203 = vadd.f32 %v201, %v202
        %204 = vadd.xlane.f32.xlu0 %v203
        %v205 = vpop.xlane.xlu0 %204
        %v206 = vmul.f32 %v205, 0.00390625
        %v209 = vunpack.c.l.s4 839922192
        %v210 = vunpack.c.0.s8 %v209
        %v211 = vlaneseq
        %v212 = vshrl.u32 %v211, 7
        %v213 = vsub.s32 %v210, %v212
        %v214 = vrot.slane %v206, %v213
        %v216 = vsub.f32 %v196, %v214
        %v217 = vmul.f32 %v216, %v216
        %v219 = vcombine.high %v217, %v217
        %v221 = vsel %vm200, %v217, 0.0
        %v222 = vsel %vm200, %v219, 0.0
        %v223 = vadd.f32 %v221, %v222
        %224 = vadd.xlane.f32.xlu0 %v223
        %v225 = vpop.xlane.xlu0 %224
        %v226 = vmul.f32 %v225, 0.003921569
        %v227 = vadd.f32 %v226, 1e-05
        %v228 = vrsqrt.pop %v227
        %v231 = vunpack.c.l.s4 839922192
        %v232 = vunpack.c.0.s8 %v231
        %v233 = vlaneseq
        %v234 = vshrl.u32 %v233, 7
        %v235 = vsub.s32 %v232, %v234
        %v236 = vrot.slane %v228, %v235
        %v238 = vmul.f32 %v216, %v236
        %v239 = vsel %vm200, %v206, 0.0
        %v240 = vrot.slane %v239, 4
        %v241 = vadd.f32 %v239, %v240
        %v242 = vrot.slane %v241, 2
        %v243 = vadd.f32 %v241, %v242
        %v244 = vrot.slane %v243, 1
        %v245 = vadd.f32 %v243, %v244
        %v246 = vmul.f32 %v245, 0.25
        %v247 = vsub.f32 %v196, %v246
        %v248 = vmul.f32 %v247, %v247
        %v250 = vcombine.high %v248, %v248
        %v252 = vsel %vm200, %v248, 0.0
        %v253 = vsel %vm200, %v250, 0.0
        %v254 = vadd.f32 %v252, %v253
        %255 = vadd.xlane.f32.xlu0 %v254
        %v256 = vpop.xlane.xlu0 %255
        %v257 = vsel %vm200, %v256, 0.0
        %v258 = vrot.slane %v257, 4
        %v259 = vadd.f32 %v257, %v258
        %v260 = vrot.slane %v259, 2
        %v261 = vadd.f32 %v259, %v260
        %v262 = vrot.slane %v261, 1
        %v263 = vadd.f32 %v261, %v262
        %v264 = vmul.f32 %v263, 0.0009775171
        %v265 = vadd.f32 %v264, 1e-05
        %v266 = vrsqrt.pop %v265
        %v267 = vmul.f32 %v247, %v266
        %v268 = vld [vmem:[%s1] sm:$0xf]
        %270 = vrot.lane.b32.xlu0 %v268, 127
        %v271 = vpop.permute.xlu0 %270
        %v273 = vmax.f32 %v268, %v271
        %v274 = vsub.f32 %v268, %v273
        %v275 = vmul.f32 %v274, 1.442695
        %v276 = vpow.pop %v275
        %278 = vrot.lane.b32.xlu0 %v273, 1
        %v279 = vpop.permute.xlu0 %278
        %v281 = vsub.f32 %v268, %v279
        %v282 = vmul.f32 %v281, 1.442695
        %v283 = vpow.pop %v282
        %285 = vrot.lane.b32.xlu0 %v283, 127
        %v286 = vpop.permute.xlu0 %285
        %v288 = vadd.f32 %v276, %v286
        %v289 = vrcp.pop %v288
        %v290 = vmul.f32 1.0, %v289
        %v291 = vmul.f32 %v276, %v290
        %293 = vrot.lane.b32.xlu0 %v290, 1
        %v294 = vpop.permute.xlu0 %293
        %v296 = vmul.f32 %v283, %v294
        %v297 = vld [vmem:[%s2] sm:$0xf]
        %v298 = vld [vmem:[%s3] sm:$0xf]
        %300 = vset.pattern.permute.xlu0 0
        %301 = vperm.xlu0 %300, %v291
        %v302 = vpop.permute.xlu0 %301
        %v305 = vcombine.high %v238, %v238
        %v307 = vmul.f32 %v302, %v238
        %v308 = vmul.f32 %v302, %v305
        %310 = vset.pattern.permute.xlu0 1
        %311 = vperm.xlu0 %310, %v296
        %v312 = vpop.permute.xlu0 %311
        %v315 = vcombine.high %v267, %v267
        %v317 = vmul.f32 %v312, %v267
        %v318 = vmul.f32 %v312, %v315
        %v319 = vadd.f32 %v307, %v317
        %v320 = vadd.f32 %v308, %v318
        %322 = vset.pattern.permute.xlu0 0
        %323 = vperm.xlu0 %322, %v297
        %v324 = vpop.permute.xlu0 %323
        %v326 = vmul.f32 %v319, %v324
        %v327 = vmul.f32 %v320, %v324
        %329 = vset.pattern.permute.xlu0 0
        %330 = vperm.xlu0 %329, %v298
        %v331 = vpop.permute.xlu0 %330
        %v333 = vadd.f32 %v326, %v331
        %v334 = vadd.f32 %v327, %v331
        %v337 = vcombine.low %v333, %v334
        %339 = vst [vmem:[%s190] sm:$0xff] %v337
        %s340 = sand.u32 %s115, 1
        %s341 = scalar_lea.sflag [#allocation3], %s340
        %s342 = sand.u32 %s115, 1
        %s343 = smul.addr %s342, 8
        %s344 = scalar_lea.vmem [#allocation2], %s343
        // Predicated region
        $region37: #{tpu_custom_call.1} parent=35 // pred_check
          %p345 = pneg %p125
        $region38: #{tpu_custom_call.1} parent=35 // pred_check_branch
          %347 = sbr.rel (%p345) target = $region40
        $region39: #{tpu_custom_call.1} parent=35 // pred_region
          %s349 = ssub.s32 128, 128
          %350 = vsyncadd %s341, %s349
          %s351 = smul.addr %s18, 2
          %s352 = smul.addr %s351, 64
          %s353 = scalar_lea.hbm %s4, %s352
          %s355 = sshll.u32 %s344, 4
          %s356 = int_to_ptr.vmem [resolvable:$true] %s355
          %358 = dma.vmem_to_hbm [thread:$0]  %s356, 128, %s353, %s341
        $region40: #{tpu_custom_call.1} parent=35 // pred_fallthru
          _
      $region36: #{tpu_custom_call.1} parent=5 // pred_fallthru
        _
      %p359 = scmp.le.s32.totalorder 2, %s13
      // Predicated region
      $region41: #{tpu_custom_call.1} parent=5 // pred_check
        %p360 = pneg %p359
      $region42: #{tpu_custom_call.1} parent=5 // pred_check_branch
        %362 = sbr.rel (%p360) target = $region44
      $region43: #{tpu_custom_call.1} parent=5 // pred_region
        %s363 = ssub.s32 %s13, 2
        // Predicated region
        $region45: #{tpu_custom_call.1} parent=43 // pred_check
          %p364 = pneg %p131
        $region46: #{tpu_custom_call.1} parent=43 // pred_check_branch
          %366 = sbr.rel (%p364) target = $region48
        $region47: #{tpu_custom_call.1} parent=43 // pred_region
          %s367 = sand.u32 %s116, 1
          %s368 = scalar_lea.sflag [#allocation3], %s367
          %s369 = sand.u32 %s116, 1
          %s370 = smul.addr %s369, 8
          %s371 = scalar_lea.vmem [#allocation2], %s370
          %372 = dma.done %s368, 128
        $region48: #{tpu_custom_call.1} parent=43 // pred_fallthru
          _
      $region44: #{tpu_custom_call.1} parent=5 // pred_fallthru
        _
    $region6: #{tpu_custom_call.1} parent=1 // loop_footer
      %s17 = sadd.s32 1, %s13
    $region7: #{tpu_custom_call.1} parent=1 // loop_footer_branch
      %12 = sbr.rel target = $region3
    $region8: #{tpu_custom_call.1} parent=1 // loop_exit
      _
    %373 = vsyncpa [#allocation3], 1
    %s374 = scalar_lea.sflag [#allocation3], 1
    %375 = vsyncpa %s374, 1

</llo_original>
